<compile_context>
chip_gen: v7x
topology: tpu7x:2x2x1
jax: 0.10.0
libtpu: 0.0.40
codegen_flags: <defaults>
</compile_context>

<pallas_src>
import jax
import jax.numpy as jnp
from jax.experimental import pallas as pl
from jax.experimental.pallas import tpu as pltpu


_DEFAULT_BLOCK_BYTES = 2 << 20  # ~2 MiB logical block; 4x double-buffered
                                # (in + out) stays under v5e's 16 MiB scoped
                                # default and leaves ample headroom on v7x.


# ----------------------------------------------------------------------------
# Kernels
# ----------------------------------------------------------------------------
def _grn_fused_kernel(x_ref, gamma_ref, beta_ref, o_ref):
    """Single-pass GRN over Nb folded batch elements.

    x_ref/o_ref: (Nb, HW, C)   gamma_ref/beta_ref: (1, C)
    """
    nb = x_ref.shape[0]
    gamma = gamma_ref[...].astype(jnp.float32)          # (1, C)
    beta = beta_ref[...].astype(o_ref.dtype)            # (1, C)
    for b in range(nb):                                 # static unroll, Nb small
        xb = x_ref[b]                                   # (HW, C), native dtype
        # (a) f32 sum-of-squares reduction, streamed (no persistent f32 copy).
        sq = jnp.sum(jnp.square(xb.astype(jnp.float32)), axis=0, keepdims=True)
        gx = jnp.sqrt(sq)                               # (1, C)
        denom = jnp.mean(gx, axis=-1, keepdims=True) + 1e-6   # (1, 1)
        inv = pl.reciprocal(denom, approx=True)         # EUP slot
        inv = inv * (2.0 - denom * inv)                 # one Newton step
        # (b) fused per-channel scale/bias apply in the input dtype.
        scale = (gamma * (gx * inv) + 1.0).astype(o_ref.dtype)  # (1, C)
        o_ref[b] = xb * scale + beta


def _grn_sumsq_kernel(x_ref, ss_ref):
    """Pass 1 (tiled HW): accumulate per-channel sum of squares in f32.

    x_ref: (1, T, C)   ss_ref: (1, 1, C) f32 (resident accumulator over T axis)
    """
    @pl.when(pl.program_id(1) == 0)
    def _():
        ss_ref[...] = jnp.zeros_like(ss_ref)

    xf = x_ref[0].astype(jnp.float32)                   # (T, C)
    ss_ref[0] += jnp.sum(xf * xf, axis=0, keepdims=True)


def _grn_apply_kernel(x_ref, scale_ref, beta_ref, o_ref):
    """Pass 2 (tiled HW): out = x * scale + beta (native dtype).

    x_ref/o_ref: (1, T, C)   scale_ref: (1, 1, C)   beta_ref: (1, C)
    """
    o_ref[0] = x_ref[0] * scale_ref[0] + beta_ref[...]


# ----------------------------------------------------------------------------
# Wrappers
# ----------------------------------------------------------------------------
def _grn_single_pass(x_flat, gamma2d, beta2d, nb, vmem_limit_bytes=None):
    n, hw, c = x_flat.shape
    cp_kwargs = dict(dimension_semantics=("parallel",))
    if vmem_limit_bytes is not None:
        cp_kwargs["vmem_limit_bytes"] = int(vmem_limit_bytes)
    return pl.pallas_call(
        _grn_fused_kernel,
        out_shape=jax.ShapeDtypeStruct((n, hw, c), x_flat.dtype),
        grid_spec=pltpu.PrefetchScalarGridSpec(
            num_scalar_prefetch=0,
            grid=(n // nb,),
            in_specs=[
                pl.BlockSpec((nb, hw, c), lambda i: (i, 0, 0)),
                pl.BlockSpec((1, c), lambda i: (0, 0)),
                pl.BlockSpec((1, c), lambda i: (0, 0)),
            ],
            out_specs=pl.BlockSpec((nb, hw, c), lambda i: (i, 0, 0)),
        ),
        compiler_params=pltpu.CompilerParams(**cp_kwargs),
    )(x_flat, gamma2d, beta2d)


def _grn_two_pass(x_flat, gamma2d, beta2d, t):
    n, hw, c = x_flat.shape
    n_t = hw // t

    # Pass 1: per-(batch, channel) sum of squares, HW axis is the reduction
    # axis (last in the grid, "arbitrary"), batch axis "parallel".
    ss = pl.pallas_call(
        _grn_sumsq_kernel,
        out_shape=jax.ShapeDtypeStruct((n, 1, c), jnp.float32),
        grid_spec=pltpu.PrefetchScalarGridSpec(
            num_scalar_prefetch=0,
            grid=(n, n_t),
            in_specs=[pl.BlockSpec((1, t, c), lambda b, s: (b, s, 0))],
            out_specs=pl.BlockSpec((1, 1, c), lambda b, s: (b, 0, 0)),
        ),
        compiler_params=pltpu.CompilerParams(
            dimension_semantics=("parallel", "arbitrary")),
    )(x_flat)

    # Tiny (N, C) scale math outside the kernel (f32).
    gx = jnp.sqrt(ss)                                              # (N,1,C)
    nx = gx / (jnp.mean(gx, axis=-1, keepdims=True) + 1e-6)
    scale = (gamma2d[None].astype(jnp.float32) * nx + 1.0).astype(x_flat.dtype)
    beta_c = beta2d.astype(x_flat.dtype)

    # Pass 2: elementwise apply; both grid axes fully parallel (megacore /
    # 2-TC friendly).
    return pl.pallas_call(
        _grn_apply_kernel,
        out_shape=jax.ShapeDtypeStruct((n, hw, c), x_flat.dtype),
        grid_spec=pltpu.PrefetchScalarGridSpec(
            num_scalar_prefetch=0,
            grid=(n, n_t),
            in_specs=[
                pl.BlockSpec((1, t, c), lambda b, s: (b, s, 0)),
                pl.BlockSpec((1, 1, c), lambda b, s: (b, 0, 0)),
                pl.BlockSpec((1, c), lambda b, s: (0, 0)),
            ],
            out_specs=pl.BlockSpec((1, t, c), lambda b, s: (b, s, 0)),
        ),
        compiler_params=pltpu.CompilerParams(
            dimension_semantics=("parallel", "parallel")),
    )(x_flat, scale, beta_c)


def _pick_hw_tile(hw, c, itemsize, max_block_bytes):
    """Largest multiple-of-8 divisor of HW whose (T, C) tile fits the budget."""
    max_rows = max_block_bytes // (c * itemsize)
    if max_rows < 8 or hw % 8 != 0:
        return None
    best = None
    t = 8
    limit = min(hw, max_rows)
    while t <= limit:
        if hw % t == 0:
            best = t
        t += 8
    return best


def grn_forward(x, gamma, beta, *, max_block_bytes=_DEFAULT_BLOCK_BYTES):
    """x: (N, H, W, C) NHWC; gamma, beta: (C,). Returns (N, H, W, C)."""
    n, h, w, c = x.shape
    hw = h * w
    x_flat = x.reshape(n, hw, c)
    gamma2d = gamma.reshape(1, c)
    beta2d = beta.reshape(1, c)

    itemsize = jnp.dtype(x.dtype).itemsize
    slab_bytes = hw * c * itemsize

    if slab_bytes <= max_block_bytes:
        # Small per-batch slab: fold as many batch elements per block as fit,
        # amortizing per-grid-step overhead.
        nb = 1
        for cand in range(n, 0, -1):
            if n % cand == 0 and cand * slab_bytes <= max_block_bytes:
                nb = cand
                break
        out_flat = _grn_single_pass(x_flat, gamma2d, beta2d, nb)
    else:
        t = _pick_hw_tile(hw, c, itemsize, max_block_bytes)
        if t is not None and t < hw:
            out_flat = _grn_two_pass(x_flat, gamma2d, beta2d, t)
        else:
            # HW not tileable into multiple-of-8 divisors: fall back to the
            # full slab and raise the scoped-VMEM limit explicitly (capped
            # below the smallest physical VMEM across generations).
            need = 4 * slab_bytes + (2 << 20)
            vmem_limit = min(int(need * 1.25), 56 << 20)
            out_flat = _grn_single_pass(
                x_flat, gamma2d, beta2d, 1, vmem_limit_bytes=vmem_limit)

    return out_flat.reshape(n, h, w, c)


def grn_reference(x, gamma, beta):
    """Pure-JAX reference mirroring the PyTorch forward."""
    xf = x.astype(jnp.float32)
    gx = jnp.sqrt(jnp.sum(xf * xf, axis=(1, 2), keepdims=True))    # (N,1,1,C)
    nx = gx / (jnp.mean(gx, axis=-1, keepdims=True) + 1e-6)        # (N,1,1,C)
    g = gamma.reshape(1, 1, 1, -1).astype(jnp.float32)
    b = beta.reshape(1, 1, 1, -1).astype(jnp.float32)
    return (g * (xf * nx) + b + xf).astype(x.dtype)


if __name__ == "__main__":
    key = jax.random.PRNGKey(0)

    # (N, H, W, C, max_block_bytes override)
    cases = [
        (2, 8, 8, 32, None),          # small, non-lane-dense C (masked-store path)
        (2, 8, 8, 256, None),         # lane-dense C (multiple of 128), batches folded
        (1, 16, 16, 256, 64 * 1024),  # forces the two-pass HW-tiled path (T=64)
    ]

    for (N, H, W, C, mbb) in cases:
        key, kx, kg, kb = jax.random.split(key, 4)
        x = jax.random.normal(kx, (N, H, W, C), dtype=jnp.float32)
        # Module __init__ uses zeros(1,1,1,dim); use small deterministic random
        # values instead so the gamma/beta path is actually exercised.
        gamma = 0.1 * jax.random.normal(kg, (C,), dtype=jnp.float32)
        beta = 0.1 * jax.random.normal(kb, (C,), dtype=jnp.float32)

        kwargs = {} if mbb is None else {"max_block_bytes": mbb}
        out = jax.block_until_ready(grn_forward(x, gamma, beta, **kwargs))
        ref = grn_reference(x, gamma, beta)

        assert out.shape == (N, H, W, C)
        err = jnp.max(jnp.abs(out.astype(jnp.float32) - ref.astype(jnp.float32)))
        assert err < 1e-4, f"case {(N, H, W, C)}: max abs err {err}"

    print("KERNEL_OK")
</pallas_src>

<mosaic_0001>
module attributes {stable_mosaic.version = 11 : i64} {
  func.func @_grn_fused_kernel(%arg0: i32, %arg1: memref<2x64x32xf32, #tpu.memory_space<vmem>>, %arg2: memref<1x32xf32, #tpu.memory_space<vmem>>, %arg3: memref<1x32xf32, #tpu.memory_space<vmem>>, %arg4: memref<2x64x32xf32, #tpu.memory_space<vmem>>) attributes {dimension_semantics = [#tpu.dimension_semantics<parallel>], iteration_bounds = array<i64: 1>, scalar_prefetch = 0 : i64, scratch_operands = 0 : i64, tpu.core_type = #tpu.core_type<tc>, window_params = [{transform_indices = @transform_0, window_bounds = array<i64: 2, 64, 32>}, {pipeline_mode = #tpu.pipeline_mode<synchronous>, transform_indices = @transform_1, window_bounds = array<i64: 1, 32>}, {pipeline_mode = #tpu.pipeline_mode<synchronous>, transform_indices = @transform_2, window_bounds = array<i64: 1, 32>}, {transform_indices = @transform_3, window_bounds = array<i64: 2, 64, 32>}]} {
    %c0 = arith.constant 0 : index
    %c0_0 = arith.constant 0 : index
    %0 = vector.load %arg2[%c0, %c0_0] : memref<1x32xf32, #tpu.memory_space<vmem>>, vector<1x32xf32>
    %c0_1 = arith.constant 0 : index
    %c0_2 = arith.constant 0 : index
    %1 = vector.load %arg3[%c0_1, %c0_2] : memref<1x32xf32, #tpu.memory_space<vmem>>, vector<1x32xf32>
    %c0_3 = arith.constant 0 : index
    %c0_4 = arith.constant 0 : index
    %c0_5 = arith.constant 0 : index
    %2 = vector.load %arg1[%c0_3, %c0_4, %c0_5] : memref<2x64x32xf32, #tpu.memory_space<vmem>>, vector<1x64x32xf32>
    %3 = vector.shape_cast %2 : vector<1x64x32xf32> to vector<64x32xf32>
    %4 = arith.mulf %3, %3 : vector<64x32xf32>
    %cst = arith.constant dense<0.000000e+00> : vector<32xf32>
    %5 = vector.multi_reduction <add>, %4, %cst [0] : vector<64x32xf32> to vector<32xf32>
    %6 = vector.shape_cast %5 : vector<32xf32> to vector<1x32xf32>
    %7 = math.sqrt %6 : vector<1x32xf32>
    %cst_6 = arith.constant dense<0.000000e+00> : vector<1xf32>
    %8 = vector.multi_reduction <add>, %7, %cst_6 [1] : vector<1x32xf32> to vector<1xf32>
    %9 = vector.shape_cast %8 : vector<1xf32> to vector<1x1xf32>
    %cst_7 = arith.constant 3.200000e+01 : f32
    %10 = vector.broadcast %cst_7 : f32 to vector<1x1xf32>
    %11 = arith.divf %9, %10 : vector<1x1xf32>
    %cst_8 = arith.constant 9.99999997E-7 : f32
    %12 = vector.broadcast %cst_8 : f32 to vector<1x1xf32>
    %13 = arith.addf %11, %12 : vector<1x1xf32>
    %14 = tpu.reciprocal %13 {approx = true} : vector<1x1xf32> -> vector<1x1xf32>
    %15 = arith.mulf %13, %14 : vector<1x1xf32>
    %cst_9 = arith.constant 2.000000e+00 : f32
    %16 = vector.broadcast %cst_9 : f32 to vector<1x1xf32>
    %17 = arith.subf %16, %15 : vector<1x1xf32>
    %18 = arith.mulf %14, %17 : vector<1x1xf32>
    %19 = vector.broadcast %18 : vector<1x1xf32> to vector<1x32xf32>
    %20 = arith.mulf %7, %19 : vector<1x32xf32>
    %21 = arith.mulf %0, %20 : vector<1x32xf32>
    %cst_10 = arith.constant 1.000000e+00 : f32
    %22 = vector.broadcast %cst_10 : f32 to vector<1x32xf32>
    %23 = arith.addf %21, %22 : vector<1x32xf32>
    %24 = vector.broadcast %23 : vector<1x32xf32> to vector<64x32xf32>
    %25 = arith.mulf %3, %24 : vector<64x32xf32>
    %26 = vector.broadcast %1 : vector<1x32xf32> to vector<64x32xf32>
    %27 = arith.addf %25, %26 : vector<64x32xf32>
    %c0_11 = arith.constant 0 : index
    %c0_12 = arith.constant 0 : index
    %c0_13 = arith.constant 0 : index
    %28 = vector.load %arg4[%c0_11, %c0_12, %c0_13] : memref<2x64x32xf32, #tpu.memory_space<vmem>>, vector<1x64x32xf32>
    %29 = vector.shape_cast %28 : vector<1x64x32xf32> to vector<64x32xf32>
    %30 = vector.shape_cast %27 : vector<64x32xf32> to vector<1x64x32xf32>
    tpu.vector_store %arg4[%c0_11, %c0_12, %c0_13], %30 {strides = array<i32>} : memref<2x64x32xf32, #tpu.memory_space<vmem>>, vector<1x64x32xf32>,
    %c1 = arith.constant 1 : index
    %c0_14 = arith.constant 0 : index
    %c0_15 = arith.constant 0 : index
    %31 = vector.load %arg1[%c1, %c0_14, %c0_15] : memref<2x64x32xf32, #tpu.memory_space<vmem>>, vector<1x64x32xf32>
    %32 = vector.shape_cast %31 : vector<1x64x32xf32> to vector<64x32xf32>
    %33 = arith.mulf %32, %32 : vector<64x32xf32>
    %cst_16 = arith.constant dense<0.000000e+00> : vector<32xf32>
    %34 = vector.multi_reduction <add>, %33, %cst_16 [0] : vector<64x32xf32> to vector<32xf32>
    %35 = vector.shape_cast %34 : vector<32xf32> to vector<1x32xf32>
    %36 = math.sqrt %35 : vector<1x32xf32>
    %cst_17 = arith.constant dense<0.000000e+00> : vector<1xf32>
    %37 = vector.multi_reduction <add>, %36, %cst_17 [1] : vector<1x32xf32> to vector<1xf32>
    %38 = vector.shape_cast %37 : vector<1xf32> to vector<1x1xf32>
    %cst_18 = arith.constant 3.200000e+01 : f32
    %39 = vector.broadcast %cst_18 : f32 to vector<1x1xf32>
    %40 = arith.divf %38, %39 : vector<1x1xf32>
    %cst_19 = arith.constant 9.99999997E-7 : f32
    %41 = vector.broadcast %cst_19 : f32 to vector<1x1xf32>
    %42 = arith.addf %40, %41 : vector<1x1xf32>
    %43 = tpu.reciprocal %42 {approx = true} : vector<1x1xf32> -> vector<1x1xf32>
    %44 = arith.mulf %42, %43 : vector<1x1xf32>
    %cst_20 = arith.constant 2.000000e+00 : f32
    %45 = vector.broadcast %cst_20 : f32 to vector<1x1xf32>
    %46 = arith.subf %45, %44 : vector<1x1xf32>
    %47 = arith.mulf %43, %46 : vector<1x1xf32>
    %48 = vector.broadcast %47 : vector<1x1xf32> to vector<1x32xf32>
    %49 = arith.mulf %36, %48 : vector<1x32xf32>
    %50 = arith.mulf %0, %49 : vector<1x32xf32>
    %cst_21 = arith.constant 1.000000e+00 : f32
    %51 = vector.broadcast %cst_21 : f32 to vector<1x32xf32>
    %52 = arith.addf %50, %51 : vector<1x32xf32>
    %53 = vector.broadcast %52 : vector<1x32xf32> to vector<64x32xf32>
    %54 = arith.mulf %32, %53 : vector<64x32xf32>
    %55 = vector.broadcast %1 : vector<1x32xf32> to vector<64x32xf32>
    %56 = arith.addf %54, %55 : vector<64x32xf32>
    %c1_22 = arith.constant 1 : index
    %c0_23 = arith.constant 0 : index
    %c0_24 = arith.constant 0 : index
    %57 = vector.load %arg4[%c1_22, %c0_23, %c0_24] : memref<2x64x32xf32, #tpu.memory_space<vmem>>, vector<1x64x32xf32>
    %58 = vector.shape_cast %57 : vector<1x64x32xf32> to vector<64x32xf32>
    %59 = vector.shape_cast %56 : vector<64x32xf32> to vector<1x64x32xf32>
    tpu.vector_store %arg4[%c1_22, %c0_23, %c0_24], %59 {strides = array<i32>} : memref<2x64x32xf32, #tpu.memory_space<vmem>>, vector<1x64x32xf32>,
    return
  }
  func.func @transform_0(%arg0: i32) -> (i32, i32, i32) {
    %c0_i32 = arith.constant 0 : i32
    %c0_i32_0 = arith.constant 0 : i32
    %c0_i32_1 = arith.constant 0 : i32
    return %arg0, %c0_i32, %c0_i32_0 : i32, i32, i32
  }
  func.func @transform_1(%arg0: i32) -> (i32, i32) {
    %c0_i32 = arith.constant 0 : i32
    %c0_i32_0 = arith.constant 0 : i32
    %c0_i32_1 = arith.constant 0 : i32
    return %c0_i32, %c0_i32_0 : i32, i32
  }
  func.func @transform_2(%arg0: i32) -> (i32, i32) {
    %c0_i32 = arith.constant 0 : i32
    %c0_i32_0 = arith.constant 0 : i32
    %c0_i32_1 = arith.constant 0 : i32
    return %c0_i32, %c0_i32_0 : i32, i32
  }
  func.func @transform_3(%arg0: i32) -> (i32, i32, i32) {
    %c0_i32 = arith.constant 0 : i32
    %c0_i32_0 = arith.constant 0 : i32
    %c0_i32_1 = arith.constant 0 : i32
    return %arg0, %c0_i32, %c0_i32_0 : i32, i32, i32
  }
}

</mosaic_0001>

<llo_original>
// kernel: tpu_custom_call.1
$region0: #{tpu_custom_call.1}
  #allocation0 [shape = 'u32[]', space=smem, size = 0x4, offset = 0x4, fixed_abs, tag = 'smem constant byte address 0x4 - core index']
  #allocation1 [shape = 'u32[144,128]{1,0:T(1,128)}', space=vmem, size = 0x12000, scoped, tag = 'internal scratch']
  %s0 = inlined_call_operand.vmem [shape: f32[2,64,32], index: 0, kind: input, shape index: {}]
  %s1 = inlined_call_operand.vmem [shape: f32[1,32], index: 1, kind: input, shape index: {}]
  %s2 = inlined_call_operand.vmem [shape: f32[1,32], index: 2, kind: input, shape index: {}]
  %s3 = inlined_call_operand.vmem [shape: f32[2,64,32], index: 3, kind: output, shape index: {}]
  %s4 = sld [smem:[#allocation0]]
  $region22: #{tpu_custom_call.1} parent=0
    _
  %s6 = ssub.s32 1, %s4
  %s7 = scalar_select 0, %s6, %s4
  // Predicated region
  $region2: #{tpu_custom_call.1} parent=0 // pred_check
    _
  $region3: #{tpu_custom_call.1} parent=0 // pred_check_branch
    %9 = sbr.rel (0) target = $region5
  $region4: #{tpu_custom_call.1} parent=0 // pred_region
    _
  $region5: #{tpu_custom_call.1} parent=0 // pred_fallthru
    _
  // Predicated region
  $region6: #{tpu_custom_call.1} parent=0 // pred_check
    _
  $region7: #{tpu_custom_call.1} parent=0 // pred_check_branch
    %11 = sbr.rel (0) target = $region9
  $region8: #{tpu_custom_call.1} parent=0 // pred_region
    _
  $region9: #{tpu_custom_call.1} parent=0 // pred_fallthru
    _
  // Predicated region
  $region10: #{tpu_custom_call.1} parent=0 // pred_check
    _
  $region11: #{tpu_custom_call.1} parent=0 // pred_check_branch
    %13 = sbr.rel (0) target = $region13
  $region12: #{tpu_custom_call.1} parent=0 // pred_region
    _
  $region13: #{tpu_custom_call.1} parent=0 // pred_fallthru
    _
  %v14 = vld [vmem:[%s1] sm:$0x1]
  %v15 = vld [vmem:[%s2] sm:$0x1]
  %v16 = vld [vmem:[%s0] sm:$0xff]
  %v17 = vld [vmem:[%s0 + $0x8] sm:$0xff]
  %v18 = vld [vmem:[%s0 + $0x10] sm:$0xff]
  %v19 = vld [vmem:[%s0 + $0x18] sm:$0xff]
  %v20 = vld [vmem:[%s0 + $0x20] sm:$0xff]
  %v21 = vld [vmem:[%s0 + $0x28] sm:$0xff]
  %v22 = vld [vmem:[%s0 + $0x30] sm:$0xff]
  %v23 = vld [vmem:[%s0 + $0x38] sm:$0xff]
  %v24 = vmul.f32 %v16, %v16
  %v25 = vmul.f32 %v17, %v17
  %v26 = vmul.f32 %v18, %v18
  %v27 = vmul.f32 %v19, %v19
  %v28 = vmul.f32 %v20, %v20
  %v29 = vmul.f32 %v21, %v21
  %v30 = vmul.f32 %v22, %v22
  %v31 = vmul.f32 %v23, %v23
  %vm32 = vcmask 261120
  %v33 = vsel %vm32, %v24, 0.0
  %v34 = vsel %vm32, %v25, 0.0
  %v35 = vadd.f32 %v33, %v34
  %v36 = vsel %vm32, %v26, 0.0
  %v37 = vadd.f32 %v35, %v36
  %v38 = vsel %vm32, %v27, 0.0
  %v39 = vadd.f32 %v37, %v38
  %v40 = vsel %vm32, %v28, 0.0
  %v41 = vadd.f32 %v39, %v40
  %v42 = vsel %vm32, %v29, 0.0
  %v43 = vadd.f32 %v41, %v42
  %v44 = vsel %vm32, %v30, 0.0
  %v45 = vadd.f32 %v43, %v44
  %v46 = vsel %vm32, %v31, 0.0
  %v47 = vadd.f32 %v45, %v46
  %v48 = vrot.slane %v47, 4
  %v49 = vadd.f32 %v47, %v48
  %v50 = vrot.slane %v49, 2
  %v51 = vadd.f32 %v49, %v50
  %v52 = vrot.slane %v51, 1
  %v53 = vadd.f32 %v51, %v52
  %v54 = vrsqrt.pop %v53
  %v55 = vmul.f32 %v53, %v54
  %vm56 = vcmp.eq.f32.partialorder %v53, inf
  %v57 = vsel %vm56, %v53, %v55
  %vm58 = vcmp.eq.f32.partialorder %v53, 0.0
  %v59 = vand.u32 %v53, 2147483648
  %v60 = vsel %vm58, %v59, %v57
  %v61 = vsel %vm32, %v60, 0.0
  %62 = vadd.xlane.f32.xlu0 %v61
  %v63 = vpop.xlane.xlu0 %62
  %v64 = vrcp.pop 32.0
  %v65 = vmul.f32 %v63, %v64
  %v66 = vadd.f32 %v65, 1e-06
  %v67 = vrcp.pop %v66
  %v68 = vmul.f32 %v66, %v67
  %v69 = vsub.f32 2.0, %v68
  %v70 = vmul.f32 %v67, %v69
  %v71 = vmul.f32 %v60, %v70
  %v72 = vmul.f32 %v14, %v71
  %v73 = vadd.f32 %v72, 1.0
  %v75 = vlaneseq
  %v76 = vshrl.u32 %v75, 7
  %v77 = vsub.s32 0, %v76
  %v78 = vrot.slane %v73, %v77
  %v80 = vmul.f32 %v16, %v78
  %v81 = vmul.f32 %v17, %v78
  %v82 = vmul.f32 %v18, %v78
  %v83 = vmul.f32 %v19, %v78
  %v84 = vmul.f32 %v20, %v78
  %v85 = vmul.f32 %v21, %v78
  %v86 = vmul.f32 %v22, %v78
  %v87 = vmul.f32 %v23, %v78
  %v89 = vlaneseq
  %v90 = vshrl.u32 %v89, 7
  %v91 = vsub.s32 0, %v90
  %v92 = vrot.slane %v15, %v91
  %v94 = vadd.f32 %v80, %v92
  %v95 = vadd.f32 %v81, %v92
  %v96 = vadd.f32 %v82, %v92
  %v97 = vadd.f32 %v83, %v92
  %v98 = vadd.f32 %v84, %v92
  %v99 = vadd.f32 %v85, %v92
  %v100 = vadd.f32 %v86, %v92
  %v101 = vadd.f32 %v87, %v92
  %102 = vst.msk [vmem:[%s3] sm:$0xff] %vm32, %v94
  %103 = vst.msk [vmem:[%s3 + $0x8] sm:$0xff] %vm32, %v95
  %104 = vst.msk [vmem:[%s3 + $0x10] sm:$0xff] %vm32, %v96
  %105 = vst.msk [vmem:[%s3 + $0x18] sm:$0xff] %vm32, %v97
  %106 = vst.msk [vmem:[%s3 + $0x20] sm:$0xff] %vm32, %v98
  %107 = vst.msk [vmem:[%s3 + $0x28] sm:$0xff] %vm32, %v99
  %108 = vst.msk [vmem:[%s3 + $0x30] sm:$0xff] %vm32, %v100
  %109 = vst.msk [vmem:[%s3 + $0x38] sm:$0xff] %vm32, %v101
  %s110 = scalar_lea.vmem %s0, 64
  %v111 = vld [vmem:[%s110] sm:$0xff]
  %v112 = vld [vmem:[%s110 + $0x8] sm:$0xff]
  %v113 = vld [vmem:[%s110 + $0x10] sm:$0xff]
  %v114 = vld [vmem:[%s110 + $0x18] sm:$0xff]
  %v115 = vld [vmem:[%s110 + $0x20] sm:$0xff]
  %v116 = vld [vmem:[%s110 + $0x28] sm:$0xff]
  %v117 = vld [vmem:[%s110 + $0x30] sm:$0xff]
  %v118 = vld [vmem:[%s110 + $0x38] sm:$0xff]
  %v119 = vmul.f32 %v111, %v111
  %v120 = vmul.f32 %v112, %v112
  %v121 = vmul.f32 %v113, %v113
  %v122 = vmul.f32 %v114, %v114
  %v123 = vmul.f32 %v115, %v115
  %v124 = vmul.f32 %v116, %v116
  %v125 = vmul.f32 %v117, %v117
  %v126 = vmul.f32 %v118, %v118
  %v127 = vsel %vm32, %v119, 0.0
  %v128 = vsel %vm32, %v120, 0.0
  %v129 = vadd.f32 %v127, %v128
  %v130 = vsel %vm32, %v121, 0.0
  %v131 = vadd.f32 %v129, %v130
  %v132 = vsel %vm32, %v122, 0.0
  %v133 = vadd.f32 %v131, %v132
  %v134 = vsel %vm32, %v123, 0.0
  %v135 = vadd.f32 %v133, %v134
  %v136 = vsel %vm32, %v124, 0.0
  %v137 = vadd.f32 %v135, %v136
  %v138 = vsel %vm32, %v125, 0.0
  %v139 = vadd.f32 %v137, %v138
  %v140 = vsel %vm32, %v126, 0.0
  %v141 = vadd.f32 %v139, %v140
  %v142 = vrot.slane %v141, 4
  %v143 = vadd.f32 %v141, %v142
  %v144 = vrot.slane %v143, 2
  %v145 = vadd.f32 %v143, %v144
  %v146 = vrot.slane %v145, 1
  %v147 = vadd.f32 %v145, %v146
  %v148 = vrsqrt.pop %v147
  %v149 = vmul.f32 %v147, %v148
  %vm150 = vcmp.eq.f32.partialorder %v147, inf
  %v151 = vsel %vm150, %v147, %v149
  %vm152 = vcmp.eq.f32.partialorder %v147, 0.0
  %v153 = vand.u32 %v147, 2147483648
  %v154 = vsel %vm152, %v153, %v151
  %v155 = vsel %vm32, %v154, 0.0
  %156 = vadd.xlane.f32.xlu0 %v155
  %v157 = vpop.xlane.xlu0 %156
  %v158 = vmul.f32 %v157, %v64
  %v159 = vadd.f32 %v158, 1e-06
  %v160 = vrcp.pop %v159
  %v161 = vmul.f32 %v159, %v160
  %v162 = vsub.f32 2.0, %v161
  %v163 = vmul.f32 %v160, %v162
  %v164 = vmul.f32 %v154, %v163
  %v165 = vmul.f32 %v14, %v164
  %v166 = vadd.f32 %v165, 1.0
  %v168 = vlaneseq
  %v169 = vshrl.u32 %v168, 7
  %v170 = vsub.s32 0, %v169
  %v171 = vrot.slane %v166, %v170
  %v173 = vmul.f32 %v111, %v171
  %v174 = vmul.f32 %v112, %v171
  %v175 = vmul.f32 %v113, %v171
  %v176 = vmul.f32 %v114, %v171
  %v177 = vmul.f32 %v115, %v171
  %v178 = vmul.f32 %v116, %v171
  %v179 = vmul.f32 %v117, %v171
  %v180 = vmul.f32 %v118, %v171
  %v181 = vadd.f32 %v173, %v92
  %v182 = vadd.f32 %v174, %v92
  %v183 = vadd.f32 %v175, %v92
  %v184 = vadd.f32 %v176, %v92
  %v185 = vadd.f32 %v177, %v92
  %v186 = vadd.f32 %v178, %v92
  %v187 = vadd.f32 %v179, %v92
  %v188 = vadd.f32 %v180, %v92
  %s189 = scalar_lea.vmem %s3, 64
  %190 = vst.msk [vmem:[%s189] sm:$0xff] %vm32, %v181
  %191 = vst.msk [vmem:[%s189 + $0x8] sm:$0xff] %vm32, %v182
  %192 = vst.msk [vmem:[%s189 + $0x10] sm:$0xff] %vm32, %v183
  %193 = vst.msk [vmem:[%s189 + $0x18] sm:$0xff] %vm32, %v184
  %194 = vst.msk [vmem:[%s189 + $0x20] sm:$0xff] %vm32, %v185
  %195 = vst.msk [vmem:[%s189 + $0x28] sm:$0xff] %vm32, %v186
  %196 = vst.msk [vmem:[%s189 + $0x30] sm:$0xff] %vm32, %v187
  %197 = vst.msk [vmem:[%s189 + $0x38] sm:$0xff] %vm32, %v188
  // Predicated region
  $region14: #{tpu_custom_call.1} parent=0 // pred_check
    _
  $region15: #{tpu_custom_call.1} parent=0 // pred_check_branch
    %199 = sbr.rel (0) target = $region17
  $region16: #{tpu_custom_call.1} parent=0 // pred_region
    _
  $region17: #{tpu_custom_call.1} parent=0 // pred_fallthru
    _
  // Predicated region
  $region18: #{tpu_custom_call.1} parent=0 // pred_check
    _
  $region19: #{tpu_custom_call.1} parent=0 // pred_check_branch
    %201 = sbr.rel (0) target = $region21
  $region20: #{tpu_custom_call.1} parent=0 // pred_region
    _
  $region21: #{tpu_custom_call.1} parent=0 // pred_fallthru
    _

</llo_original>
